<compile_context>
chip_gen: v6e
topology: v6e:2x2x1
jax: 0.10.0
libtpu: 0.0.40
codegen_flags: <defaults>
</compile_context>

<pallas_src>
import numpy as np
import jax
import jax.numpy as jnp
from jax.experimental import pallas as pl
from jax.experimental.pallas import tpu as pltpu


# ----------------------------------------------------------------------------
# Positional table (mirrors PyTorch PositionalEncoding.__init__)
# ----------------------------------------------------------------------------
def make_positional_encoding(d_model: int, max_len: int = 5000, dtype=jnp.float32):
    pos = jnp.arange(0, max_len, dtype=jnp.float32)[:, None]                 # (max_len, 1)
    div = jnp.exp(jnp.arange(0, d_model, 2, dtype=jnp.float32)
                  * (-np.log(10000.0) / d_model))                            # (ceil(d/2),)
    pe = jnp.zeros((max_len, d_model), dtype=jnp.float32)
    pe = pe.at[:, 0::2].set(jnp.sin(pos * div))
    pe = pe.at[:, 1::2].set(jnp.cos(pos * div)[:, : d_model // 2])
    return pe.astype(dtype)                                                  # (max_len, d_model)


def _round_up(n: int, m: int) -> int:
    return ((n + m - 1) // m) * m


def _vmem_capacity_bytes() -> int:
    try:
        return int(pltpu.get_tpu_info().vmem_capacity_bytes)
    except Exception:
        return 64 * 1024 * 1024          # conservative fallback (v7x per-TC VMEM)


# ----------------------------------------------------------------------------
# 1) Standalone PositionalEncoding.forward:  out = x + pe[:T][None]
# ----------------------------------------------------------------------------
def _pe_add_kernel(x_ref, pe_ref, o_ref):
    # x_ref / o_ref: (Bb, tt, D) tile; pe_ref: (tt, D), broadcast over batch.
    o_ref[...] = x_ref[...] + pe_ref[...][None, :, :]


def _choose_tiles(B, T, D, itemsize):
    """Pick (batch_tile, seq_tile, vmem_limit_bytes).

    Working set = 6 tile buffers (pe is double-buffered too): x (2-deep) and
    out (2-deep) of (Bb, tt, D) plus pe (2-deep) of (tt, D).  Budget ~40% of
    physical VMEM (~25 MiB on v7x's 64 MiB, ~50 MiB on v5e/v6e's 128 MiB);
    larger row cap on the 128 MiB generations.
    """
    vmem_phys = _vmem_capacity_bytes()
    budget = max(int(vmem_phys * 0.4), 8 * 1024 * 1024)
    max_rows = 8192 if vmem_phys >= 96 * 1024 * 1024 else 2048
    row_bytes = D * itemsize

    def working_set(bb, tt):
        return (4 * bb + 2) * tt * row_bytes

    # Round the seq tile UP so small T (e.g. S = 98) gets one full-width tile
    # instead of a full tile plus a tiny masked remainder step.
    tt = min(_round_up(T, 8), max_rows)
    bb = B
    if working_set(bb, tt) > budget:
        # Shrink the sequence tile first (keeps the whole batch per step).
        tt = max(((budget // ((4 * bb + 2) * row_bytes)) // 8) * 8, 8)
    if working_set(bb, tt) > budget:
        # Very large batch: tile the batch axis as well.
        bb = max((budget // (tt * row_bytes) - 2) // 4, 1)

    vmem_limit = int(min(max(2 * working_set(bb, tt) + (4 << 20), 16 << 20),
                         vmem_phys - (8 << 20)))
    return bb, tt, vmem_limit


def positional_encoding_forward(x, pe):
    """x: (B, T, D); pe: (max_len, D). Returns x + pe[None, :T, :]."""
    B, T, D = x.shape
    max_len, D_pe = pe.shape
    assert D_pe == D, "pe last dim must match x last dim"
    assert T <= max_len, f"sequence length {T} exceeds positional table {max_len}"
    if pe.dtype != x.dtype:
        pe = pe.astype(x.dtype)   # keep the add in the compute dtype

    bb, tt, vmem_limit = _choose_tiles(B, T, D, x.dtype.itemsize)
    n_t = pl.cdiv(T, tt)
    n_b = pl.cdiv(B, bb)

    return pl.pallas_call(
        _pe_add_kernel,
        out_shape=jax.ShapeDtypeStruct((B, T, D), x.dtype),
        grid_spec=pltpu.PrefetchScalarGridSpec(
            num_scalar_prefetch=0,
            # Batch (if tiled at all) is innermost so the pe block index (t, 0)
            # is unchanged across consecutive steps and the pe tile stays
            # resident.  For the real workload this is a single grid step.
            grid=(n_t, n_b),
            in_specs=[
                pl.BlockSpec((bb, tt, D), lambda t, b: (b, t, 0)),   # x tile
                pl.BlockSpec((tt, D),     lambda t, b: (t, 0)),      # pe tile (full table)
            ],
            out_specs=pl.BlockSpec((bb, tt, D), lambda t, b: (b, t, 0)),
        ),
        compiler_params=pltpu.CompilerParams(
            # TODO(synk): on v7x, switch the seq-tile axis to pltpu.CORE_PARALLEL
            # (or split with pl.core_map) so both TensorCores share the stream
            # when n_t > 1; at n_t == 1 it would be a no-op.
            dimension_semantics=("parallel", "arbitrary"),
            vmem_limit_bytes=vmem_limit,
        ),
        # NOTE: if x is dead after this op, add input_output_aliases={0: 0} to
        # reuse its HBM buffer; left off here because the caller still uses x.
    )(x, pe)


# ----------------------------------------------------------------------------
# 2) token_embed Linear with the PE add fused into the matmul epilogue
# ----------------------------------------------------------------------------
def _embed_posenc_kernel(tok_ref, w_ref, b_ref, pe_ref, o_ref):
    # tok_ref: (B, TJ, Kp); w_ref: (Kp, D); b_ref: (1, D); pe_ref: (TJ, D);
    # o_ref: (B, TJ, D).  PE is added before the single store -> one HBM
    # round trip for the embedded activation.
    w = w_ref[...]
    bias = b_ref[...]
    pe = pe_ref[...]
    for b in range(tok_ref.shape[0]):          # static unroll over the small batch
        emb = jnp.dot(tok_ref[b], w, preferred_element_type=jnp.float32)
        o_ref[b] = (emb + bias + pe).astype(o_ref.dtype)


def token_embed_posenc(tokens, w, b, pe_body):
    """tokens: (B, TJ, Kp); w: (Kp, D); b: (D,); pe_body: (TJ, D).
    Returns tokens @ w + b + pe_body[None, :, :]."""
    B, TJ, Kp = tokens.shape
    D = w.shape[1]
    # TODO(synk): for long sequences / big batches, tile TJ and B like the PE
    # kernel; one block is ample for the real workload (B=2, T*J=96, D=128).
    return pl.pallas_call(
        _embed_posenc_kernel,
        out_shape=jax.ShapeDtypeStruct((B, TJ, D), tokens.dtype),
        grid_spec=pltpu.PrefetchScalarGridSpec(
            num_scalar_prefetch=0,
            grid=(1,),
            in_specs=[
                pl.BlockSpec((B, TJ, Kp), lambda i: (0, 0, 0)),
                pl.BlockSpec((Kp, D),     lambda i: (0, 0)),
                pl.BlockSpec((1, D),      lambda i: (0, 0)),
                pl.BlockSpec((TJ, D),     lambda i: (0, 0)),
            ],
            out_specs=pl.BlockSpec((B, TJ, D), lambda i: (0, 0, 0)),
        ),
        compiler_params=pltpu.CompilerParams(
            dimension_semantics=("arbitrary",),
        ),
    )(tokens, w, b.reshape(1, D), pe_body)


def lifter_embed_and_posenc(x2d, k, seg, params, pe):
    """Embedding + positional-encoding stage of TransformerLifter.forward:
    returns the (B, 2 + T*J, D_MODEL) sequence that feeds the encoder."""
    B, T, Jn, _ = x2d.shape
    TJ = T * Jn
    D = params["w_tok"].shape[1]
    assert 2 + TJ <= pe.shape[0]

    # Build the D_IN = 2+3+6 pose tokens (cheap vs. the D_MODEL activations).
    k_exp = jnp.broadcast_to(k[:, None, None, :], (B, T, Jn, k.shape[-1]))
    seg_exp = jnp.broadcast_to(seg[:, None, None, :], (B, T, Jn, seg.shape[-1]))
    tokens = jnp.concatenate([x2d, k_exp, seg_exp], axis=-1).reshape(B, TJ, -1)
    d_in = tokens.shape[-1]

    # Zero-pad the contraction dim to the 128-lane MXU width (exact: the padded
    # columns multiply zero weights; the MXU would pad/mask D_IN=11 anyway).
    kp = _round_up(d_in, 128)
    tokens_p = jnp.pad(tokens, ((0, 0), (0, 0), (0, kp - d_in)))
    w_p = jnp.pad(params["w_tok"], ((0, kp - d_in), (0, 0)))

    body = token_embed_posenc(tokens_p, w_p, params["b_tok"],
                              pe[2:2 + TJ].astype(x2d.dtype))

    # The two prefix tokens are only (B, 2, D): plain JAX.
    k_tok = params["k_token"] + (k @ params["w_k"] + params["b_k"])[:, None, :]
    seg_tok = params["seg_token"] + (seg @ params["w_seg"] + params["b_seg"])[:, None, :]
    prefix = jnp.concatenate([k_tok, seg_tok], axis=1) + pe[:2][None]
    return jnp.concatenate([prefix, body], axis=1)


# ----------------------------------------------------------------------------
if __name__ == "__main__":
    D_IN, D_MODEL, Jn = 11, 128, 12
    B, T = 2, 8
    S = 2 + T * Jn                     # 98 tokens: [k_tok, seg_tok, T*J pose tokens]
    max_len = 5000

    ks = jax.random.split(jax.random.PRNGKey(0), 10)
    pe = make_positional_encoding(D_MODEL, max_len=max_len)

    # ---- 1) standalone PositionalEncoding.forward ----
    x = jax.random.normal(ks[0], (B, S, D_MODEL), dtype=jnp.float32)
    out = jax.block_until_ready(positional_encoding_forward(x, pe))
    ref = x + pe[:S][None, :, :]
    np.testing.assert_allclose(np.asarray(out), np.asarray(ref), rtol=1e-6, atol=1e-6)

    # ---- 2) token-embedding Linear with fused PE epilogue ----
    x2d = jax.random.normal(ks[1], (B, T, Jn, 2), dtype=jnp.float32)
    k_in = jax.random.normal(ks[2], (B, 3), dtype=jnp.float32)
    seg_in = jax.random.normal(ks[3], (B, 6), dtype=jnp.float32)
    params = dict(
        w_tok=0.1 * jax.random.normal(ks[4], (D_IN, D_MODEL), jnp.float32),
        b_tok=0.1 * jax.random.normal(ks[5], (D_MODEL,), jnp.float32),
        w_k=0.1 * jax.random.normal(ks[6], (3, D_MODEL), jnp.float32),
        b_k=0.1 * jax.random.normal(ks[7], (D_MODEL,), jnp.float32),
        w_seg=0.1 * jax.random.normal(ks[8], (6, D_MODEL), jnp.float32),
        b_seg=0.1 * jax.random.normal(ks[9], (D_MODEL,), jnp.float32),
        k_token=jnp.zeros((1, 1, D_MODEL), jnp.float32),
        seg_token=jnp.zeros((1, 1, D_MODEL), jnp.float32),
    )
    seq = jax.block_until_ready(lifter_embed_and_posenc(x2d, k_in, seg_in, params, pe))

    # Pure-JAX reference (== the PyTorch forward up to and including pos_enc).
    tokens_ref = jnp.concatenate(
        [x2d,
         jnp.broadcast_to(k_in[:, None, None, :], (B, T, Jn, 3)),
         jnp.broadcast_to(seg_in[:, None, None, :], (B, T, Jn, 6))],
        axis=-1).reshape(B, T * Jn, D_IN)
    emb_ref = jnp.einsum("bti,id->btd", tokens_ref, params["w_tok"],
                         precision=jax.lax.Precision.HIGHEST) + params["b_tok"]
    k_tok_ref = params["k_token"] + (k_in @ params["w_k"] + params["b_k"])[:, None, :]
    seg_tok_ref = params["seg_token"] + (seg_in @ params["w_seg"] + params["b_seg"])[:, None, :]
    seq_ref = jnp.concatenate([k_tok_ref, seg_tok_ref, emb_ref], axis=1) + pe[:S][None]
    # Loose-ish tolerance: the f32 MXU matmul may run as bf16 passes.
    np.testing.assert_allclose(np.asarray(seq), np.asarray(seq_ref), rtol=3e-3, atol=3e-3)

    print("KERNEL_OK")
</pallas_src>

<mosaic_0001>
module attributes {stable_mosaic.version = 11 : i64} {
  func.func @_pe_add_kernel(%arg0: i32, %arg1: i32, %arg2: memref<2x104x128xf32, #tpu.memory_space<vmem>>, %arg3: memref<104x128xf32, #tpu.memory_space<vmem>>, %arg4: memref<2x104x128xf32, #tpu.memory_space<vmem>>) attributes {dimension_semantics = [#tpu.dimension_semantics<parallel>, #tpu.dimension_semantics<arbitrary>], iteration_bounds = array<i64: 1, 1>, scalar_prefetch = 0 : i64, scratch_operands = 0 : i64, tpu.core_type = #tpu.core_type<tc>, window_params = [{transform_indices = @transform_0, window_bounds = array<i64: 2, 104, 128>}, {transform_indices = @transform_1, window_bounds = array<i64: 104, 128>}, {transform_indices = @transform_2, window_bounds = array<i64: 2, 104, 128>}]} {
    %c0 = arith.constant 0 : index
    %c0_0 = arith.constant 0 : index
    %c0_1 = arith.constant 0 : index
    %0 = vector.load %arg2[%c0, %c0_0, %c0_1] : memref<2x104x128xf32, #tpu.memory_space<vmem>>, vector<2x104x128xf32>
    %c0_2 = arith.constant 0 : index
    %c0_3 = arith.constant 0 : index
    %1 = vector.load %arg3[%c0_2, %c0_3] : memref<104x128xf32, #tpu.memory_space<vmem>>, vector<104x128xf32>
    %2 = vector.shape_cast %1 : vector<104x128xf32> to vector<1x104x128xf32>
    %3 = vector.broadcast %2 : vector<1x104x128xf32> to vector<2x104x128xf32>
    %4 = arith.addf %0, %3 : vector<2x104x128xf32>
    %c0_4 = arith.constant 0 : index
    %c0_5 = arith.constant 0 : index
    %c0_6 = arith.constant 0 : index
    %5 = vector.load %arg4[%c0_4, %c0_5, %c0_6] : memref<2x104x128xf32, #tpu.memory_space<vmem>>, vector<2x104x128xf32>
    tpu.vector_store %arg4[%c0_4, %c0_5, %c0_6], %4 {strides = array<i32>} : memref<2x104x128xf32, #tpu.memory_space<vmem>>, vector<2x104x128xf32>,
    return
  }
  func.func @transform_0(%arg0: i32, %arg1: i32) -> (i32, i32, i32) {
    %c0_i32 = arith.constant 0 : i32
    %c0_i32_0 = arith.constant 0 : i32
    return %arg1, %arg0, %c0_i32 : i32, i32, i32
  }
  func.func @transform_1(%arg0: i32, %arg1: i32) -> (i32, i32) {
    %c0_i32 = arith.constant 0 : i32
    %c0_i32_0 = arith.constant 0 : i32
    return %arg0, %c0_i32 : i32, i32
  }
  func.func @transform_2(%arg0: i32, %arg1: i32) -> (i32, i32, i32) {
    %c0_i32 = arith.constant 0 : i32
    %c0_i32_0 = arith.constant 0 : i32
    return %arg1, %arg0, %c0_i32 : i32, i32, i32
  }
}

</mosaic_0001>

<llo_original>
// kernel: tpu_custom_call.1
$region0: #{tpu_custom_call.1}
  #allocation0 [shape = 'u32[]', space=smem, size = 0x4, offset = 0x4, fixed_abs, tag = 'smem constant byte address 0x4 - core index']
  #allocation1 [shape = 'u32[144,128]{1,0:T(1,128)}', space=vmem, size = 0x12000, scoped, tag = 'internal scratch']
  %s0 = inlined_call_operand.vmem [shape: f32[2,98,128], index: 0, kind: input, shape index: {}]
  %s1 = inlined_call_operand.hbm [shape: f32[5000,128], index: 1, kind: input, shape index: {}]
  %s2 = inlined_call_operand.vmem [shape: f32[2,98,128], index: 2, kind: output, shape index: {}]
  %s3 = sld [smem:[#allocation0]]
  $region22: #{tpu_custom_call.1} parent=0
    _
  %s5 = ssub.s32 1, %s3
  %s6 = scalar_select 0, %s5, %s3
  $region1: #{tpu_custom_call.1} parent=0
    #allocation2 [shape = 'u8[53248]{0}', space=vmem, size = 0xd000, scoped, tag = 'input window, operand 1, single buffered']
    #allocation3 [shape = 's32[1]{0}', space=sflag, size = 0x4, scoped, tag = 'scoped memory for tpu_custom_call.1']
    %7 = vsyncpa [#allocation3], 0
    // Predicated region
    $region2: #{tpu_custom_call.1} parent=1 // pred_check
      _
    $region3: #{tpu_custom_call.1} parent=1 // pred_check_branch
      %9 = sbr.rel (0) target = $region5
    $region4: #{tpu_custom_call.1} parent=1 // pred_region
      _
    $region5: #{tpu_custom_call.1} parent=1 // pred_fallthru
      _
    // Predicated region
    $region6: #{tpu_custom_call.1} parent=1 // pred_check
      _
    $region7: #{tpu_custom_call.1} parent=1 // pred_check_branch
      %11 = sbr.rel (0) target = $region9
    $region8: #{tpu_custom_call.1} parent=1 // pred_region
      %s13 = ssub.s32 1664, 1664
      %14 = vsyncadd [#allocation3], %s13
      %s15 = sshll.u32 [#allocation2], 4
      %s16 = int_to_ptr.vmem [resolvable:$true] %s15
      %21 = dma.hbm_to_vmem [thread:$0]  %s1, 1664, %s16, [#allocation3], 128, 128, 8
    $region9: #{tpu_custom_call.1} parent=1 // pred_fallthru
      _
    // Predicated region
    $region10: #{tpu_custom_call.1} parent=1 // pred_check
      _
    $region11: #{tpu_custom_call.1} parent=1 // pred_check_branch
      %23 = sbr.rel (0) target = $region13
    $region12: #{tpu_custom_call.1} parent=1 // pred_region
      %24 = dma.done [#allocation3], 1664
    $region13: #{tpu_custom_call.1} parent=1 // pred_fallthru
      _
    %v25 = vld [vmem:[%s0] sm:$0xff]
    %v26 = vld [vmem:[%s0 + $0x8] sm:$0xff]
    %v27 = vld [vmem:[%s0 + $0x10] sm:$0xff]
    %v28 = vld [vmem:[%s0 + $0x18] sm:$0xff]
    %v29 = vld [vmem:[%s0 + $0x20] sm:$0xff]
    %v30 = vld [vmem:[%s0 + $0x28] sm:$0xff]
    %v31 = vld [vmem:[%s0 + $0x30] sm:$0xff]
    %v32 = vld [vmem:[%s0 + $0x38] sm:$0xff]
    %v33 = vld [vmem:[%s0 + $0x40] sm:$0xff]
    %v34 = vld [vmem:[%s0 + $0x48] sm:$0xff]
    %v35 = vld [vmem:[%s0 + $0x50] sm:$0xff]
    %v36 = vld [vmem:[%s0 + $0x58] sm:$0xff]
    %v37 = vld [vmem:[%s0 + $0x60] sm:$0xff]
    %v38 = vld [vmem:[%s0 + $0x68] sm:$0xff]
    %v39 = vld [vmem:[%s0 + $0x70] sm:$0xff]
    %v40 = vld [vmem:[%s0 + $0x78] sm:$0xff]
    %v41 = vld [vmem:[%s0 + $0x80] sm:$0xff]
    %v42 = vld [vmem:[%s0 + $0x88] sm:$0xff]
    %v43 = vld [vmem:[%s0 + $0x90] sm:$0xff]
    %v44 = vld [vmem:[%s0 + $0x98] sm:$0xff]
    %v45 = vld [vmem:[%s0 + $0xa0] sm:$0xff]
    %v46 = vld [vmem:[%s0 + $0xa8] sm:$0xff]
    %v47 = vld [vmem:[%s0 + $0xb0] sm:$0xff]
    %v48 = vld [vmem:[%s0 + $0xb8] sm:$0xff]
    %v49 = vld [vmem:[%s0 + $0xc0] sm:$0xff]
    %v50 = vld [vmem:[%s0 + $0xc8] sm:$0xff]
    %v51 = vld [vmem:[#allocation2] sm:$0xff]
    %v52 = vld [vmem:[#allocation2 + $0x8] sm:$0xff]
    %v53 = vld [vmem:[#allocation2 + $0x10] sm:$0xff]
    %v54 = vld [vmem:[#allocation2 + $0x18] sm:$0xff]
    %v55 = vld [vmem:[#allocation2 + $0x20] sm:$0xff]
    %v56 = vld [vmem:[#allocation2 + $0x28] sm:$0xff]
    %v57 = vld [vmem:[#allocation2 + $0x30] sm:$0xff]
    %v58 = vld [vmem:[#allocation2 + $0x38] sm:$0xff]
    %v59 = vld [vmem:[#allocation2 + $0x40] sm:$0xff]
    %v60 = vld [vmem:[#allocation2 + $0x48] sm:$0xff]
    %v61 = vld [vmem:[#allocation2 + $0x50] sm:$0xff]
    %v62 = vld [vmem:[#allocation2 + $0x58] sm:$0xff]
    %v63 = vld [vmem:[#allocation2 + $0x60] sm:$0xff]
    %v64 = vadd.f32 %v25, %v51
    %v65 = vadd.f32 %v26, %v52
    %v66 = vadd.f32 %v27, %v53
    %v67 = vadd.f32 %v28, %v54
    %v68 = vadd.f32 %v29, %v55
    %v69 = vadd.f32 %v30, %v56
    %v70 = vadd.f32 %v31, %v57
    %v71 = vadd.f32 %v32, %v58
    %v72 = vadd.f32 %v33, %v59
    %v73 = vadd.f32 %v34, %v60
    %v74 = vadd.f32 %v35, %v61
    %v75 = vadd.f32 %v36, %v62
    %v76 = vadd.f32 %v37, %v63
    %v77 = vadd.f32 %v38, %v51
    %v78 = vadd.f32 %v39, %v52
    %v79 = vadd.f32 %v40, %v53
    %v80 = vadd.f32 %v41, %v54
    %v81 = vadd.f32 %v42, %v55
    %v82 = vadd.f32 %v43, %v56
    %v83 = vadd.f32 %v44, %v57
    %v84 = vadd.f32 %v45, %v58
    %v85 = vadd.f32 %v46, %v59
    %v86 = vadd.f32 %v47, %v60
    %v87 = vadd.f32 %v48, %v61
    %v88 = vadd.f32 %v49, %v62
    %v89 = vadd.f32 %v50, %v63
    %90 = vst [vmem:[%s2] sm:$0xff] %v64
    %91 = vst [vmem:[%s2 + $0x8] sm:$0xff] %v65
    %92 = vst [vmem:[%s2 + $0x10] sm:$0xff] %v66
    %93 = vst [vmem:[%s2 + $0x18] sm:$0xff] %v67
    %94 = vst [vmem:[%s2 + $0x20] sm:$0xff] %v68
    %95 = vst [vmem:[%s2 + $0x28] sm:$0xff] %v69
    %96 = vst [vmem:[%s2 + $0x30] sm:$0xff] %v70
    %97 = vst [vmem:[%s2 + $0x38] sm:$0xff] %v71
    %98 = vst [vmem:[%s2 + $0x40] sm:$0xff] %v72
    %99 = vst [vmem:[%s2 + $0x48] sm:$0xff] %v73
    %100 = vst [vmem:[%s2 + $0x50] sm:$0xff] %v74
    %101 = vst [vmem:[%s2 + $0x58] sm:$0xff] %v75
    %102 = vst [vmem:[%s2 + $0x60] sm:$0xff] %v76
    %103 = vst [vmem:[%s2 + $0x68] sm:$0xff] %v77
    %104 = vst [vmem:[%s2 + $0x70] sm:$0xff] %v78
    %105 = vst [vmem:[%s2 + $0x78] sm:$0xff] %v79
    %106 = vst [vmem:[%s2 + $0x80] sm:$0xff] %v80
    %107 = vst [vmem:[%s2 + $0x88] sm:$0xff] %v81
    %108 = vst [vmem:[%s2 + $0x90] sm:$0xff] %v82
    %109 = vst [vmem:[%s2 + $0x98] sm:$0xff] %v83
    %110 = vst [vmem:[%s2 + $0xa0] sm:$0xff] %v84
    %111 = vst [vmem:[%s2 + $0xa8] sm:$0xff] %v85
    %112 = vst [vmem:[%s2 + $0xb0] sm:$0xff] %v86
    %113 = vst [vmem:[%s2 + $0xb8] sm:$0xff] %v87
    %114 = vst [vmem:[%s2 + $0xc0] sm:$0xff] %v88
    %115 = vst [vmem:[%s2 + $0xc8] sm:$0xff] %v89
    // Predicated region
    $region14: #{tpu_custom_call.1} parent=1 // pred_check
      _
    $region15: #{tpu_custom_call.1} parent=1 // pred_check_branch
      %117 = sbr.rel (0) target = $region17
    $region16: #{tpu_custom_call.1} parent=1 // pred_region
      _
    $region17: #{tpu_custom_call.1} parent=1 // pred_fallthru
      _
    // Predicated region
    $region18: #{tpu_custom_call.1} parent=1 // pred_check
      _
    $region19: #{tpu_custom_call.1} parent=1 // pred_check_branch
      %119 = sbr.rel (0) target = $region21
    $region20: #{tpu_custom_call.1} parent=1 // pred_region
      _
    $region21: #{tpu_custom_call.1} parent=1 // pred_fallthru
      _
    %120 = vsyncpa [#allocation3], 1

</llo_original>
